<compile_context>
chip_gen: v5e
topology: v5e:2x2
jax: 0.10.0
libtpu: 0.0.40
codegen_flags: <defaults>
</compile_context>

<pallas_src>
import functools

import jax
import jax.numpy as jnp
from jax import lax
from jax.experimental import pallas as pl
from jax.experimental.pallas import tpu as pltpu

# Scoped-VMEM budget: safe on v5e/v6e (128 MiB physical) and v7x (64 MiB physical).
_VMEM_LIMIT = 32 * 1024 * 1024


def _pick_tile(dim, cap, mult):
    """Largest divisor of `dim` that is <= cap and a multiple of `mult`.
    Falls back to the full dim (block == full array dim is always legal)."""
    if dim <= cap:
        return dim
    for t in range(cap, 0, -1):
        if dim % t == 0 and t % mult == 0:
            return t
    return dim


# ---------------------------------------------------------------------------
# Kernels
# ---------------------------------------------------------------------------

def _matmul_kernel(x_ref, w_ref, o_ref, acc_ref):
    """Tiled bf16 matmul with f32 accumulation across the K grid axis."""
    k = pl.program_id(2)

    @pl.when(k == 0)
    def _init():
        acc_ref[...] = jnp.zeros_like(acc_ref)

    acc_ref[...] += jnp.dot(x_ref[...], w_ref[...],
                            preferred_element_type=jnp.float32)

    @pl.when(k == pl.num_programs(2) - 1)
    def _fin():
        o_ref[...] = acc_ref[...].astype(o_ref.dtype)


def _matmul_bias_kernel(x_ref, w_ref, b_ref, o_ref, acc_ref):
    """Tiled bf16 matmul + bias (bias added once, in f32, at the finalize step)."""
    k = pl.program_id(2)

    @pl.when(k == 0)
    def _init():
        acc_ref[...] = jnp.zeros_like(acc_ref)

    acc_ref[...] += jnp.dot(x_ref[...], w_ref[...],
                            preferred_element_type=jnp.float32)

    @pl.when(k == pl.num_programs(2) - 1)
    def _fin():
        o_ref[...] = (acc_ref[...] + b_ref[...].astype(jnp.float32)).astype(o_ref.dtype)


def _flash_attn_kernel(q_ref, k_ref, v_ref, o_ref, m_sc, l_sc, acc_sc,
                       *, heads, dim_head):
    """Flash-attention step: one q-tile vs one kv-tile, all heads (online softmax).

    q_ref/k_ref/v_ref blocks are (1, t, heads*dim_head) lane-dense tiles of the
    fused projection output; heads are sliced out in VMEM (the softmax scale is
    already folded into Wq).  Softmax math is in f32; only the MXU sees bf16.
    """
    ki = pl.program_id(2)

    @pl.when(ki == 0)
    def _init():
        m_sc[...] = jnp.full_like(m_sc, -jnp.inf)
        l_sc[...] = jnp.zeros_like(l_sc)
        acc_sc[...] = jnp.zeros_like(acc_sc)

    q = q_ref[0]                       # (tq, H) bf16, already scaled via Wq
    k = k_ref[0]                       # (tk, H) bf16
    v = v_ref[0]                       # (tk, H) bf16

    for h in range(heads):
        sl = slice(h * dim_head, (h + 1) * dim_head)
        q_h = q[:, sl]                 # (tq, d)
        k_h = k[:, sl]                 # (tk, d)
        v_h = v[:, sl]                 # (tk, d)

        # q @ k^T contracting the last dims (no explicit transpose op).
        s = lax.dot_general(q_h, k_h, (((1,), (1,)), ((), ())),
                            preferred_element_type=jnp.float32)       # (tq, tk)

        m_prev = m_sc[h]                                               # (tq, 1)
        m_new = jnp.maximum(m_prev, s.max(axis=-1, keepdims=True))
        alpha = jnp.exp(m_prev - m_new)
        p = jnp.exp(s - m_new)                                         # (tq, tk) f32

        l_sc[h] = alpha * l_sc[h] + p.sum(axis=-1, keepdims=True)
        pv = lax.dot_general(p.astype(v_h.dtype), v_h, (((1,), (0,)), ((), ())),
                             preferred_element_type=jnp.float32)       # (tq, d)
        acc_sc[h] = alpha * acc_sc[h] + pv
        m_sc[h] = m_new

    @pl.when(ki == pl.num_programs(2) - 1)
    def _fin():
        # Emit a lane-dense (tq, heads*dim_head) output tile (heads merged).
        for h in range(heads):
            sl = slice(h * dim_head, (h + 1) * dim_head)
            inv_l = pl.reciprocal(l_sc[h], approx=True)   # EUP slot, nearly free
            o_ref[0, :, sl] = (acc_sc[h] * inv_l).astype(o_ref.dtype)


# ---------------------------------------------------------------------------
# pallas_call wrappers
# ---------------------------------------------------------------------------

def pallas_matmul(x2d, w, out_dtype):
    """Tiled, pipelined (M, K) @ (K, N) with f32 accumulation."""
    M, K = x2d.shape
    K2, N = w.shape
    assert K == K2
    tm = _pick_tile(M, 512, 8)
    tn = _pick_tile(N, 512, 128)
    tk = _pick_tile(K, 512, 128)
    grid = (M // tm, N // tn, K // tk)
    return pl.pallas_call(
        _matmul_kernel,
        out_shape=jax.ShapeDtypeStruct((M, N), out_dtype),
        grid_spec=pltpu.PrefetchScalarGridSpec(
            num_scalar_prefetch=0,
            grid=grid,
            in_specs=[pl.BlockSpec((tm, tk), lambda i, j, k: (i, k)),
                      pl.BlockSpec((tk, tn), lambda i, j, k: (k, j))],
            out_specs=pl.BlockSpec((tm, tn), lambda i, j, k: (i, j)),
            scratch_shapes=[pltpu.VMEM((tm, tn), jnp.float32)]),
        compiler_params=pltpu.CompilerParams(
            dimension_semantics=("parallel", "parallel", "arbitrary"),
            vmem_limit_bytes=_VMEM_LIMIT),
    )(x2d, w)


def pallas_matmul_bias(x2d, w, bias, out_dtype):
    """Tiled, pipelined (M, K) @ (K, N) + bias with f32 accumulation."""
    M, K = x2d.shape
    K2, N = w.shape
    assert K == K2
    tm = _pick_tile(M, 512, 8)
    tn = _pick_tile(N, 512, 128)
    tk = _pick_tile(K, 512, 128)
    grid = (M // tm, N // tn, K // tk)
    bias2d = bias.reshape(1, N)
    return pl.pallas_call(
        _matmul_bias_kernel,
        out_shape=jax.ShapeDtypeStruct((M, N), out_dtype),
        grid_spec=pltpu.PrefetchScalarGridSpec(
            num_scalar_prefetch=0,
            grid=grid,
            in_specs=[pl.BlockSpec((tm, tk), lambda i, j, k: (i, k)),
                      pl.BlockSpec((tk, tn), lambda i, j, k: (k, j)),
                      pl.BlockSpec((1, tn), lambda i, j, k: (0, j))],
            out_specs=pl.BlockSpec((tm, tn), lambda i, j, k: (i, j)),
            scratch_shapes=[pltpu.VMEM((tm, tn), jnp.float32)]),
        compiler_params=pltpu.CompilerParams(
            dimension_semantics=("parallel", "parallel", "arbitrary"),
            vmem_limit_bytes=_VMEM_LIMIT),
    )(x2d, w, bias2d)


def pallas_flash_attention(q_arr, k_arr, v_arr, q_slot, k_slot, v_slot,
                           heads, dim_head):
    """Flash attention reading fused projection buffers directly.

    q_arr: (b, n, Wq), k_arr/v_arr: (b, m, Wk) where each W is a multiple of
    H = heads*dim_head; the *_slot arguments pick which H-wide column block of
    the last axis holds q / k / v.  Returns (b, n, H) in bf16 (heads merged,
    lane-dense layout ready for the output projection matmul).
    """
    b, n, _ = q_arr.shape
    _, m, _ = k_arr.shape
    H = heads * dim_head
    for arr in (q_arr, k_arr, v_arr):
        assert arr.shape[0] == b and arr.shape[2] % H == 0
        assert arr.shape[2] == H or H % 128 == 0, (
            "heads*dim_head must be a multiple of 128 for lane-dense flash blocks")
    tq = _pick_tile(n, 256, 8)
    tk = _pick_tile(m, 256, 8)
    grid = (b, n // tq, m // tk)
    kernel = functools.partial(_flash_attn_kernel, heads=heads, dim_head=dim_head)
    return pl.pallas_call(
        kernel,
        out_shape=jax.ShapeDtypeStruct((b, n, H), jnp.bfloat16),
        grid_spec=pltpu.PrefetchScalarGridSpec(
            num_scalar_prefetch=0,
            grid=grid,
            in_specs=[
                pl.BlockSpec((1, tq, H), lambda bi, qi, ki, s=q_slot: (bi, qi, s)),
                pl.BlockSpec((1, tk, H), lambda bi, qi, ki, s=k_slot: (bi, ki, s)),
                pl.BlockSpec((1, tk, H), lambda bi, qi, ki, s=v_slot: (bi, ki, s)),
            ],
            out_specs=pl.BlockSpec((1, tq, H), lambda bi, qi, ki: (bi, qi, 0)),
            scratch_shapes=[pltpu.VMEM((heads, tq, 1), jnp.float32),
                            pltpu.VMEM((heads, tq, 1), jnp.float32),
                            pltpu.VMEM((heads, tq, dim_head), jnp.float32)]),
        compiler_params=pltpu.CompilerParams(
            dimension_semantics=("parallel", "parallel", "arbitrary"),
            vmem_limit_bytes=_VMEM_LIMIT),
    )(q_arr, k_arr, v_arr)


# ---------------------------------------------------------------------------
# Attention module (JAX glue around the Pallas kernels)
# ---------------------------------------------------------------------------

class AttentionPallas:
    def __init__(self, query_dim, context_dim=None, heads=8, dim_head=64,
                 dropout=0.0, key=None):
        if key is None:
            key = jax.random.PRNGKey(0)
        inner_dim = dim_head * heads
        context_dim = context_dim if context_dim is not None else query_dim
        self.scale = dim_head ** -0.5
        self.heads = heads
        self.dim_head = dim_head
        self.query_dim = query_dim
        self.inner_dim = inner_dim

        k1, k2, k3, k4 = jax.random.split(key, 4)
        # f32 master weights (kept for the plain-JAX reference check).
        self.wq = 0.02 * jax.random.normal(k1, (query_dim, inner_dim), jnp.float32)
        self.wkv = 0.02 * jax.random.normal(k2, (context_dim, inner_dim * 2), jnp.float32)
        self.wo = 0.02 * jax.random.normal(k3, (inner_dim, query_dim), jnp.float32)
        self.bo = 0.02 * jax.random.normal(k4, (query_dim,), jnp.float32)

        # bf16 kernel weights, pre-transposed to (in, out).  The softmax scale is
        # folded into Wq (exact same math as scaling sim afterwards); the output
        # bias stays f32 and is added inside the f32 accumulator.
        self.wq_bf = (self.wq * self.scale).astype(jnp.bfloat16)
        self.wkv_bf = self.wkv.astype(jnp.bfloat16)
        self.w_qkv_bf = jnp.concatenate([self.wq * self.scale, self.wkv],
                                        axis=1).astype(jnp.bfloat16)   # (C, 3*H)
        self.wo_bf = self.wo.astype(jnp.bfloat16)

    def __call__(self, x, context=None):
        b, n, _ = x.shape
        H = self.inner_dim
        xb = x.astype(jnp.bfloat16)

        if context is None:
            # Fused QKV projection; the output stays in its natural (b, n, 3*H)
            # layout (free reshape) - no host-side head-split transpose.
            qkv = pallas_matmul(xb.reshape(b * n, -1), self.w_qkv_bf,
                                jnp.bfloat16).reshape(b, n, 3 * H)
            q_arr = k_arr = v_arr = qkv
            q_slot, k_slot, v_slot = 0, 1, 2
        else:
            m = context.shape[1]
            cb = context.astype(jnp.bfloat16)
            q_arr = pallas_matmul(xb.reshape(b * n, -1), self.wq_bf,
                                  jnp.bfloat16).reshape(b, n, H)
            kv = pallas_matmul(cb.reshape(b * m, -1), self.wkv_bf,
                               jnp.bfloat16).reshape(b, m, 2 * H)
            k_arr = v_arr = kv
            q_slot, k_slot, v_slot = 0, 0, 1

        # Flash-style scaled dot-product attention -> (b, n, H) bf16, lane-dense.
        out_h = pallas_flash_attention(q_arr, k_arr, v_arr,
                                       q_slot, k_slot, v_slot,
                                       self.heads, self.dim_head)

        # Output projection with bias (single K = H contraction).  Dropout p=0.0.
        out = pallas_matmul_bias(out_h.reshape(b * n, H), self.wo_bf, self.bo,
                                 jnp.float32)
        return out.reshape(b, n, self.query_dim)


# ---------------------------------------------------------------------------
# Demo + correctness check
# ---------------------------------------------------------------------------

if __name__ == "__main__":
    key = jax.random.PRNGKey(0)
    kx, kp = jax.random.split(key)

    # Small shapes; heads*dim_head = 128 so flash blocks are lane-dense.
    b, n, query_dim = 2, 16, 64
    heads, dim_head = 2, 64

    x = jax.random.normal(kx, (b, n, query_dim), jnp.float32)

    attn = AttentionPallas(query_dim, heads=heads, dim_head=dim_head, key=kp)
    out = jax.block_until_ready(attn(x))

    # Plain-JAX f32 reference (mirrors the PyTorch module's math).
    def ref(x):
        q = x.reshape(b * n, -1) @ attn.wq
        kv = x.reshape(b * n, -1) @ attn.wkv
        k_, v_ = jnp.split(kv, 2, axis=-1)

        def sh(t):
            return t.reshape(b, n, heads, dim_head).transpose(0, 2, 1, 3).reshape(
                b * heads, n, dim_head)

        qh, kh, vh = sh(q), sh(k_), sh(v_)
        sim = jnp.einsum('bid,bjd->bij', qh, kh) * attn.scale
        p = jax.nn.softmax(sim, axis=-1)
        o = jnp.einsum('bij,bjd->bid', p, vh)
        o = o.reshape(b, heads, n, dim_head).transpose(0, 2, 1, 3).reshape(
            b * n, heads * dim_head)
        return (o @ attn.wo + attn.bo).reshape(b, n, -1)

    ref_out = ref(x)
    assert out.shape == (b, n, query_dim)
    # bf16 matmul operands (deliberate, per perf review) => loose-ish tolerance.
    err = float(jnp.max(jnp.abs(out - ref_out)))
    assert err < 1e-2, err

    print("KERNEL_OK")
</pallas_src>

<mosaic_0001>
module attributes {stable_mosaic.version = 11 : i64} {
  func.func @_matmul_kernel(%arg0: i32, %arg1: i32, %arg2: i32, %arg3: memref<32x64xbf16, #tpu.memory_space<vmem>>, %arg4: memref<64x384xbf16, #tpu.memory_space<vmem>>, %arg5: memref<32x384xbf16, #tpu.memory_space<vmem>>, %arg6: memref<32x384xf32, #tpu.memory_space<vmem>>) attributes {dimension_semantics = [#tpu.dimension_semantics<parallel>, #tpu.dimension_semantics<parallel>, #tpu.dimension_semantics<arbitrary>], iteration_bounds = array<i64: 1, 1, 1>, scalar_prefetch = 0 : i64, scratch_operands = 1 : i64, tpu.core_type = #tpu.core_type<tc>, window_params = [{transform_indices = @transform_0, window_bounds = array<i64: 32, 64>}, {transform_indices = @transform_1, window_bounds = array<i64: 64, 384>}, {transform_indices = @transform_2, window_bounds = array<i64: 32, 384>}]} {
    %c0_i32 = arith.constant 0 : i32
    %0 = arith.cmpi eq, %arg2, %c0_i32 : i32
    %1 = arith.extui %0 : i1 to i32
    %c0_i32_0 = arith.constant 0 : i32
    %2 = arith.cmpi ne, %1, %c0_i32_0 : i32
    scf.if %2 {
      %cst_10 = arith.constant 0.000000e+00 : f32
      %12 = vector.broadcast %cst_10 : f32 to vector<32x384xf32>
      %c0_11 = arith.constant 0 : index
      %c0_12 = arith.constant 0 : index
      %13 = vector.load %arg6[%c0_11, %c0_12] : memref<32x384xf32, #tpu.memory_space<vmem>>, vector<32x384xf32>
      tpu.vector_store %arg6[%c0_11, %c0_12], %12 {strides = array<i32>} : memref<32x384xf32, #tpu.memory_space<vmem>>, vector<32x384xf32>,
    } else {
    }
    %c0 = arith.constant 0 : index
    %c0_1 = arith.constant 0 : index
    %3 = vector.load %arg6[%c0, %c0_1] : memref<32x384xf32, #tpu.memory_space<vmem>>, vector<32x384xf32>
    %c0_2 = arith.constant 0 : index
    %c0_3 = arith.constant 0 : index
    %4 = vector.load %arg3[%c0_2, %c0_3] : memref<32x64xbf16, #tpu.memory_space<vmem>>, vector<32x64xbf16>
    %c0_4 = arith.constant 0 : index
    %c0_5 = arith.constant 0 : index
    %5 = vector.load %arg4[%c0_4, %c0_5] : memref<64x384xbf16, #tpu.memory_space<vmem>>, vector<64x384xbf16>
    %cst = arith.constant dense<0.000000e+00> : vector<32x384xf32>
    %6 = tpu.matmul %4, %5, %cst {dimension_numbers = #tpu.dot_dimension_numbers<[1], [0], [0], [1], [0, 0, 1, 1], [], []>} : vector<32x64xbf16>, vector<64x384xbf16>, vector<32x384xf32> -> vector<32x384xf32>
    %7 = arith.addf %3, %6 : vector<32x384xf32>
    %c0_6 = arith.constant 0 : index
    %c0_7 = arith.constant 0 : index
    %8 = vector.load %arg6[%c0_6, %c0_7] : memref<32x384xf32, #tpu.memory_space<vmem>>, vector<32x384xf32>
    tpu.vector_store %arg6[%c0_6, %c0_7], %7 {strides = array<i32>} : memref<32x384xf32, #tpu.memory_space<vmem>>, vector<32x384xf32>,
    %c0_i32_8 = arith.constant 0 : i32
    %9 = arith.cmpi eq, %arg2, %c0_i32_8 : i32
    %10 = arith.extui %9 : i1 to i32
    %c0_i32_9 = arith.constant 0 : i32
    %11 = arith.cmpi ne, %10, %c0_i32_9 : i32
    scf.if %11 {
      %c0_10 = arith.constant 0 : index
      %c0_11 = arith.constant 0 : index
      %12 = vector.load %arg6[%c0_10, %c0_11] : memref<32x384xf32, #tpu.memory_space<vmem>>, vector<32x384xf32>
      %13 = arith.truncf %12 : vector<32x384xf32> to vector<32x384xbf16>
      %c0_12 = arith.constant 0 : index
      %c0_13 = arith.constant 0 : index
      %14 = vector.load %arg5[%c0_12, %c0_13] : memref<32x384xbf16, #tpu.memory_space<vmem>>, vector<32x384xbf16>
      tpu.vector_store %arg5[%c0_12, %c0_13], %13 {strides = array<i32>} : memref<32x384xbf16, #tpu.memory_space<vmem>>, vector<32x384xbf16>,
    } else {
    }
    return
  }
  func.func @transform_0(%arg0: i32, %arg1: i32, %arg2: i32) -> (i32, i32) {
    %c0_i32 = arith.constant 0 : i32
    return %arg0, %arg2 : i32, i32
  }
  func.func @transform_1(%arg0: i32, %arg1: i32, %arg2: i32) -> (i32, i32) {
    %c0_i32 = arith.constant 0 : i32
    return %arg2, %arg1 : i32, i32
  }
  func.func @transform_2(%arg0: i32, %arg1: i32, %arg2: i32) -> (i32, i32) {
    %c0_i32 = arith.constant 0 : i32
    return %arg0, %arg1 : i32, i32
  }
}

</mosaic_0001>

<llo_original>
// kernel: tpu_custom_call.1
$region0: #{tpu_custom_call.1}
  #allocation0 [shape = 'u32[]', space=smem, size = 0x4, offset = 0x4, fixed_abs, tag = 'smem constant byte address 0x4 - core index']
  #allocation1 [shape = 'u32[72,128]{1,0:T(1,128)}', space=vmem, size = 0x9000, scoped, tag = 'internal scratch']
  #allocation2 [shape = 'f32[32,384]{1,0:T(8,128)}', space=vmem, size = 0xc000, scoped, tag = 'scratch operand']
  %s0 = inlined_call_operand.hbm [shape: bf16[32,64], index: 0, kind: input, shape index: {}]
  %s1 = inlined_call_operand.hbm [shape: bf16[64,384], index: 1, kind: input, shape index: {}]
  %s2 = inlined_call_operand.hbm [shape: bf16[32,384], index: 2, kind: output, shape index: {}]
  %s3 = sld [smem:[#allocation0]]
  $region34: #{tpu_custom_call.1} parent=0
    _
  %s5 = ssub.s32 1, %s3
  %s6 = scalar_select 0, %s5, %s3
  $region1: #{tpu_custom_call.1} parent=0
    #allocation3 [shape = 'u8[8192]{0}', space=vmem, size = 0x2000, scoped, tag = 'input window, operand 0, single buffered']
    #allocation4 [shape = 's32[1]{0}', space=sflag, size = 0x4, scoped, tag = 'scoped memory for tpu_custom_call.1']
    #allocation5 [shape = 's32[1]{0}', space=sflag, size = 0x4, scoped, tag = 'scoped memory for tpu_custom_call.1']
    #allocation6 [shape = 'u8[49152]{0}', space=vmem, size = 0xc000, scoped, tag = 'input window, operand 1, single buffered']
    #allocation7 [shape = 's32[1]{0}', space=sflag, size = 0x4, scoped, tag = 'scoped memory for tpu_custom_call.1']
    #allocation8 [shape = 'u8[24576]{0}', space=vmem, size = 0x6000, scoped, tag = 'output window, operand 0, single buffered']
    %7 = vsyncpa [#allocation4], 0
    %8 = vsyncpa [#allocation7], 0
    %9 = vsyncpa [#allocation5], 0
    // Predicated region
    $region2: #{tpu_custom_call.1} parent=1 // pred_check
      _
    $region3: #{tpu_custom_call.1} parent=1 // pred_check_branch
      %11 = sbr.rel (0) target = $region5
    $region4: #{tpu_custom_call.1} parent=1 // pred_region
      %13 = vsyncadd [#allocation4], 0
      %s14 = sshll.u32 %s0, 4
      %s15 = int_to_ptr.hbm [resolvable:$true] %s14
      %s16 = sshll.u32 [#allocation3], 4
      %s17 = int_to_ptr.vmem [resolvable:$true] %s16
      %22 = dma.hbm_to_vmem [thread:$0]  %s15, 256, %s17, [#allocation4], 64, 64, 4
    $region5: #{tpu_custom_call.1} parent=1 // pred_fallthru
      _
    // Predicated region
    $region6: #{tpu_custom_call.1} parent=1 // pred_check
      _
    $region7: #{tpu_custom_call.1} parent=1 // pred_check_branch
      %24 = sbr.rel (0) target = $region9
    $region8: #{tpu_custom_call.1} parent=1 // pred_region
      %26 = vsyncadd [#allocation7], 0
      %s27 = sshll.u32 %s1, 4
      %s28 = int_to_ptr.hbm [resolvable:$true] %s27
      %s29 = sshll.u32 [#allocation6], 4
      %s30 = int_to_ptr.vmem [resolvable:$true] %s29
      %35 = dma.hbm_to_vmem [thread:$0]  %s28, 1536, %s30, [#allocation7], 192, 192, 12
    $region9: #{tpu_custom_call.1} parent=1 // pred_fallthru
      _
    // Predicated region
    $region10: #{tpu_custom_call.1} parent=1 // pred_check
      _
    $region11: #{tpu_custom_call.1} parent=1 // pred_check_branch
      %37 = sbr.rel (0) target = $region13
    $region12: #{tpu_custom_call.1} parent=1 // pred_region
      %39 = dma.done [#allocation4], 256
    $region13: #{tpu_custom_call.1} parent=1 // pred_fallthru
      _
    // Predicated region
    $region14: #{tpu_custom_call.1} parent=1 // pred_check
      _
    $region15: #{tpu_custom_call.1} parent=1 // pred_check_branch
      %41 = sbr.rel (0) target = $region17
    $region16: #{tpu_custom_call.1} parent=1 // pred_region
      %43 = dma.done [#allocation7], 1536
    $region17: #{tpu_custom_call.1} parent=1 // pred_fallthru
      _
    %p45 = scmp.eq.s32.totalorder 0, 0
    // Predicated region
    $region18: #{tpu_custom_call.1} parent=1 // pred_check
      %p46 = pneg %p45
    $region19: #{tpu_custom_call.1} parent=1 // pred_check_branch
      %48 = sbr.rel (%p46) target = $region21
    $region20: #{tpu_custom_call.1} parent=1 // pred_region
      %49 = vst [vmem:[#allocation2] sm:$0xff] 0.0
      %50 = vst [vmem:[#allocation2 + $0x8] sm:$0xff] 0.0
      %51 = vst [vmem:[#allocation2 + $0x10] sm:$0xff] 0.0
      %52 = vst [vmem:[#allocation2 + $0x18] sm:$0xff] 0.0
      %53 = vst [vmem:[#allocation2 + $0x20] sm:$0xff] 0.0
      %54 = vst [vmem:[#allocation2 + $0x28] sm:$0xff] 0.0
      %55 = vst [vmem:[#allocation2 + $0x30] sm:$0xff] 0.0
      %56 = vst [vmem:[#allocation2 + $0x38] sm:$0xff] 0.0
      %57 = vst [vmem:[#allocation2 + $0x40] sm:$0xff] 0.0
      %58 = vst [vmem:[#allocation2 + $0x48] sm:$0xff] 0.0
      %59 = vst [vmem:[#allocation2 + $0x50] sm:$0xff] 0.0
      %60 = vst [vmem:[#allocation2 + $0x58] sm:$0xff] 0.0
    $region21: #{tpu_custom_call.1} parent=1 // pred_fallthru
      _
    %v61 = vld [vmem:[#allocation2] sm:$0xff]
    %v62 = vld [vmem:[#allocation2 + $0x8] sm:$0xff]
    %v63 = vld [vmem:[#allocation2 + $0x10] sm:$0xff]
    %v64 = vld [vmem:[#allocation2 + $0x18] sm:$0xff]
    %v65 = vld [vmem:[#allocation2 + $0x20] sm:$0xff]
    %v66 = vld [vmem:[#allocation2 + $0x28] sm:$0xff]
    %v67 = vld [vmem:[#allocation2 + $0x30] sm:$0xff]
    %v68 = vld [vmem:[#allocation2 + $0x38] sm:$0xff]
    %v69 = vld [vmem:[#allocation2 + $0x40] sm:$0xff]
    %v70 = vld [vmem:[#allocation2 + $0x48] sm:$0xff]
    %v71 = vld [vmem:[#allocation2 + $0x50] sm:$0xff]
    %v72 = vld [vmem:[#allocation2 + $0x58] sm:$0xff]
    %v73 = vld [vmem:[#allocation3] sm:$0xf]
    %v74 = vld [vmem:[#allocation3 + $0x4] sm:$0xf]
    %v75 = vld [vmem:[#allocation3 + $0x8] sm:$0xf]
    %v76 = vld [vmem:[#allocation3 + $0xc] sm:$0xf]
    %v77 = vld [vmem:[#allocation6] sm:$0xff]
    %v78 = vld [vmem:[#allocation6 + $0x8] sm:$0xf]
    %v79 = vld [vmem:[#allocation6 + $0xc] sm:$0xff]
    %v80 = vld [vmem:[#allocation6 + $0x14] sm:$0xf]
    %v81 = vld [vmem:[#allocation6 + $0x18] sm:$0xff]
    %v82 = vld [vmem:[#allocation6 + $0x20] sm:$0xf]
    %v83 = vld [vmem:[#allocation6 + $0x24] sm:$0xff]
    %v84 = vld [vmem:[#allocation6 + $0x2c] sm:$0xf]
    %v85 = vld [vmem:[#allocation6 + $0x30] sm:$0xff]
    %v86 = vld [vmem:[#allocation6 + $0x38] sm:$0xf]
    %v87 = vld [vmem:[#allocation6 + $0x3c] sm:$0xff]
    %v88 = vld [vmem:[#allocation6 + $0x44] sm:$0xf]
    %v89 = vld [vmem:[#allocation6 + $0x48] sm:$0xff]
    %v90 = vld [vmem:[#allocation6 + $0x50] sm:$0xf]
    %v91 = vld [vmem:[#allocation6 + $0x54] sm:$0xff]
    %v92 = vld [vmem:[#allocation6 + $0x5c] sm:$0xf]
    %v97 = vunpack.c.l.b16 %v73
    %v98 = vunpack.c.l.b16 %v74
    %v99 = vunpack.c.l.b16 %v75
    %v100 = vunpack.c.l.b16 %v76
    %v101 = vpack.c.b16 %v98, %v97
    %v102 = vpack.c.b16 %v100, %v99
    %v119 = vunpack.c.l.b16 %v77
    %v120 = vunpack.c.h.b16 %v77
    %v121 = vunpack.c.l.b16 %v78
    %v122 = vunpack.c.l.b16 %v79
    %v123 = vunpack.c.h.b16 %v79
    %v124 = vunpack.c.l.b16 %v80
    %v125 = vunpack.c.l.b16 %v81
    %v126 = vunpack.c.h.b16 %v81
    %v127 = vunpack.c.l.b16 %v82
    %v128 = vunpack.c.l.b16 %v83
    %v129 = vunpack.c.h.b16 %v83
    %v130 = vunpack.c.l.b16 %v84
    %v131 = vunpack.c.l.b16 %v85
    %v132 = vunpack.c.h.b16 %v85
    %v133 = vunpack.c.l.b16 %v86
    %v134 = vunpack.c.l.b16 %v87
    %v135 = vunpack.c.h.b16 %v87
    %v136 = vunpack.c.l.b16 %v88
    %v137 = vunpack.c.l.b16 %v89
    %v138 = vunpack.c.h.b16 %v89
    %v139 = vunpack.c.l.b16 %v90
    %v140 = vunpack.c.l.b16 %v91
    %v141 = vunpack.c.h.b16 %v91
    %v142 = vunpack.c.l.b16 %v92
    %v143 = vpack.c.b16 %v122, %v119
    %v144 = vpack.c.b16 %v123, %v120
    %v145 = vpack.c.b16 %v124, %v121
    %v146 = vpack.c.b16 %v128, %v125
    %v147 = vpack.c.b16 %v129, %v126
    %v148 = vpack.c.b16 %v130, %v127
    %v149 = vpack.c.b16 %v134, %v131
    %v150 = vpack.c.b16 %v135, %v132
    %v151 = vpack.c.b16 %v136, %v133
    %v152 = vpack.c.b16 %v140, %v137
    %v153 = vpack.c.b16 %v141, %v138
    %v154 = vpack.c.b16 %v142, %v139
    %vm167 = vcmask 523264
    %v169 = vsel %vm167, %v101, 0
    %v172 = vsel %vm167, %v102, 0
    %174 = vmatpush.bf16.msra.mxu0 0
    %175 = vmatpush.bf16.msra.mxu0 0
    %176 = vmatpush.bf16.msra.mxu0 0
    %177 = vmatpush.bf16.msra.mxu0 0
    %178 = vmatpush.bf16.msra.mxu0 %v152
    %179 = vmatpush.bf16.msra.mxu0 %v149
    %180 = vmatpush.bf16.msra.mxu0 %v146
    %181 = vmatpush.bf16.msra.mxu0 %v143
    %182 = vmatmul.bf16.gmra.mxu0 %v169
    %v183 = vpop.f32.mrf.mxu0
    %v184 = vadd.f32 0.0, %v183
    %v185 = vpop.f32.mrf.mxu0
    %v186 = vadd.f32 0.0, %v185
    %187 = vmatmul.bf16.gmra.mxu0 %v172
    %v188 = vpop.f32.mrf.mxu0
    %v189 = vadd.f32 0.0, %v188
    %v190 = vpop.f32.mrf.mxu0
    %v191 = vadd.f32 0.0, %v190
    %192 = vdwg.mxu0
    %193 = vmatpush.bf16.msra.mxu0 0
    %194 = vmatpush.bf16.msra.mxu0 0
    %195 = vmatpush.bf16.msra.mxu0 0
    %196 = vmatpush.bf16.msra.mxu0 0
    %197 = vmatpush.bf16.msra.mxu0 %v153
    %198 = vmatpush.bf16.msra.mxu0 %v150
    %199 = vmatpush.bf16.msra.mxu0 %v147
    %200 = vmatpush.bf16.msra.mxu0 %v144
    %201 = vmatmul.bf16.gmra.mxu0 %v169
    %v202 = vpop.f32.mrf.mxu0
    %v203 = vadd.f32 0.0, %v202
    %v204 = vpop.f32.mrf.mxu0
    %v205 = vadd.f32 0.0, %v204
    %206 = vmatmul.bf16.gmra.mxu0 %v172
    %v207 = vpop.f32.mrf.mxu0
    %v208 = vadd.f32 0.0, %v207
    %v209 = vpop.f32.mrf.mxu0
    %v210 = vadd.f32 0.0, %v209
    %211 = vdwg.mxu0
    %212 = vmatpush.bf16.msra.mxu0 0
    %213 = vmatpush.bf16.msra.mxu0 0
    %214 = vmatpush.bf16.msra.mxu0 0
    %215 = vmatpush.bf16.msra.mxu0 0
    %216 = vmatpush.bf16.msra.mxu0 %v154
    %217 = vmatpush.bf16.msra.mxu0 %v151
    %218 = vmatpush.bf16.msra.mxu0 %v148
    %219 = vmatpush.bf16.msra.mxu0 %v145
    %220 = vmatmul.bf16.gmra.mxu0 %v169
    %v221 = vpop.f32.mrf.mxu0
    %v222 = vadd.f32 0.0, %v221
    %v223 = vpop.f32.mrf.mxu0
    %v224 = vadd.f32 0.0, %v223
    %225 = vmatmul.bf16.gmra.mxu0 %v172
    %v226 = vpop.f32.mrf.mxu0
    %v227 = vadd.f32 0.0, %v226
    %v228 = vpop.f32.mrf.mxu0
    %v229 = vadd.f32 0.0, %v228
    %230 = vdwg.mxu0
    %v231 = vadd.f32 %v61, %v184
    %v232 = vadd.f32 %v62, %v203
    %v233 = vadd.f32 %v63, %v222
    %v234 = vadd.f32 %v64, %v186
    %v235 = vadd.f32 %v65, %v205
    %v236 = vadd.f32 %v66, %v224
    %v237 = vadd.f32 %v67, %v189
    %v238 = vadd.f32 %v68, %v208
    %v239 = vadd.f32 %v69, %v227
    %v240 = vadd.f32 %v70, %v191
    %v241 = vadd.f32 %v71, %v210
    %v242 = vadd.f32 %v72, %v229
    %243 = vst [vmem:[#allocation2] sm:$0xff] %v231
    %244 = vst [vmem:[#allocation2 + $0x8] sm:$0xff] %v232
    %245 = vst [vmem:[#allocation2 + $0x10] sm:$0xff] %v233
    %246 = vst [vmem:[#allocation2 + $0x18] sm:$0xff] %v234
    %247 = vst [vmem:[#allocation2 + $0x20] sm:$0xff] %v235
    %248 = vst [vmem:[#allocation2 + $0x28] sm:$0xff] %v236
    %249 = vst [vmem:[#allocation2 + $0x30] sm:$0xff] %v237
    %250 = vst [vmem:[#allocation2 + $0x38] sm:$0xff] %v238
    %251 = vst [vmem:[#allocation2 + $0x40] sm:$0xff] %v239
    %252 = vst [vmem:[#allocation2 + $0x48] sm:$0xff] %v240
    %253 = vst [vmem:[#allocation2 + $0x50] sm:$0xff] %v241
    %254 = vst [vmem:[#allocation2 + $0x58] sm:$0xff] %v242
    // Predicated region
    $region22: #{tpu_custom_call.1} parent=1 // pred_check
      %p255 = pneg %p45
    $region23: #{tpu_custom_call.1} parent=1 // pred_check_branch
      %257 = sbr.rel (%p255) target = $region25
    $region24: #{tpu_custom_call.1} parent=1 // pred_region
      %v258 = vld [vmem:[#allocation2] sm:$0xff]
      %v259 = vld [vmem:[#allocation2 + $0x8] sm:$0xff]
      %v260 = vld [vmem:[#allocation2 + $0x10] sm:$0xff]
      %v261 = vld [vmem:[#allocation2 + $0x18] sm:$0xff]
      %v262 = vld [vmem:[#allocation2 + $0x20] sm:$0xff]
      %v263 = vld [vmem:[#allocation2 + $0x28] sm:$0xff]
      %v264 = vld [vmem:[#allocation2 + $0x30] sm:$0xff]
      %v265 = vld [vmem:[#allocation2 + $0x38] sm:$0xff]
      %v266 = vld [vmem:[#allocation2 + $0x40] sm:$0xff]
      %v267 = vld [vmem:[#allocation2 + $0x48] sm:$0xff]
      %v268 = vld [vmem:[#allocation2 + $0x50] sm:$0xff]
      %v269 = vld [vmem:[#allocation2 + $0x58] sm:$0xff]
      %v270 = vpack.c.bf16 %v259, %v258
      %v271 = vpack.c.bf16 %v260, %v260
      %v272 = vpack.c.bf16 %v262, %v261
      %v273 = vpack.c.bf16 %v263, %v263
      %v274 = vpack.c.bf16 %v265, %v264
      %v275 = vpack.c.bf16 %v266, %v266
      %v276 = vpack.c.bf16 %v268, %v267
      %v277 = vpack.c.bf16 %v269, %v269
      %278 = vst [vmem:[#allocation8] sm:$0xff] %v270
      %279 = vst [vmem:[#allocation8 + $0x8] sm:$0xf] %v271
      %280 = vst [vmem:[#allocation8 + $0xc] sm:$0xff] %v272
      %281 = vst [vmem:[#allocation8 + $0x14] sm:$0xf] %v273
      %282 = vst [vmem:[#allocation8 + $0x18] sm:$0xff] %v274
      %283 = vst [vmem:[#allocation8 + $0x20] sm:$0xf] %v275
      %284 = vst [vmem:[#allocation8 + $0x24] sm:$0xff] %v276
      %285 = vst [vmem:[#allocation8 + $0x2c] sm:$0xf] %v277
    $region25: #{tpu_custom_call.1} parent=1 // pred_fallthru
      _
    // Predicated region
    $region26: #{tpu_custom_call.1} parent=1 // pred_check
      _
    $region27: #{tpu_custom_call.1} parent=1 // pred_check_branch
      %287 = sbr.rel (0) target = $region29
    $region28: #{tpu_custom_call.1} parent=1 // pred_region
      %289 = vsyncadd [#allocation5], 0
      %s290 = sshll.u32 [#allocation8], 4
      %s291 = int_to_ptr.vmem [resolvable:$true] %s290
      %s292 = sshll.u32 %s2, 4
      %s293 = int_to_ptr.hbm [resolvable:$true] %s292
      %298 = dma.vmem_to_hbm [thread:$0]  %s291, 768, %s293, [#allocation5], 192, 192, 12
    $region29: #{tpu_custom_call.1} parent=1 // pred_fallthru
      _
    // Predicated region
    $region30: #{tpu_custom_call.1} parent=1 // pred_check
      _
    $region31: #{tpu_custom_call.1} parent=1 // pred_check_branch
      %300 = sbr.rel (0) target = $region33
    $region32: #{tpu_custom_call.1} parent=1 // pred_region
      %302 = dma.done [#allocation5], 768
    $region33: #{tpu_custom_call.1} parent=1 // pred_fallthru
      _
    %303 = vsyncpa [#allocation4], 1
    %304 = vsyncpa [#allocation7], 1
    %305 = vsyncpa [#allocation5], 1

</llo_original>
